<compile_context>
chip_gen: v7x
topology: tpu7x:2x2x1
jax: 0.10.0
libtpu: 0.0.40
codegen_flags: <defaults>
</compile_context>

<pallas_src>
import functools

import jax
import jax.numpy as jnp
from jax.experimental import pallas as pl
from jax.experimental.pallas import tpu as pltpu


def _rmsnorm_kernel(x_ref, w_ref, o_ref, *, eps, strict_roundtrip):
    # x_ref: (tile_rows, hidden), w_ref: (1, hidden), o_ref: (tile_rows, hidden)
    x = x_ref[...].astype(jnp.float32)                     # hidden_states.float()
    variance = jnp.mean(x * x, axis=-1, keepdims=True)     # .pow(2).mean(-1, keepdim=True)
    normed = x * jax.lax.rsqrt(variance + eps)             # x * rsqrt(var + eps)
    if strict_roundtrip and x_ref.dtype != jnp.float32:
        # torch: ._norm(x.float()).type_as(x) before the weight multiply.
        # Keep the round-trip only when it actually changes bits.  On v7x
        # bf16 paths this pack/unpack pair can be turned off via
        # strict_dtype_roundtrip=False if bit parity is not required.
        normed = normed.astype(x_ref.dtype).astype(jnp.float32)
    # weight (f32) * normed, then a single cast to the output dtype
    o_ref[...] = (w_ref[...].astype(jnp.float32) * normed).astype(o_ref.dtype)


def _round_up(x, m):
    return ((x + m - 1) // m) * m


def _row_alignment(dtype):
    # sublane packing: 8 rows/vreg for 32-bit, 16 for bf16, 32 for 8-bit types
    itemsize = jnp.dtype(dtype).itemsize
    return max(8, 32 // max(itemsize, 1))


def _vmem_params():
    """(block_budget_bytes, vmem_limit_bytes) sized to this TPU generation."""
    cap = None
    try:
        cap = int(pltpu.get_tpu_info().vmem_capacity_bytes)
    except Exception:
        cap = None
    if cap is None or cap <= 0:
        cap = 64 * 1024 * 1024  # conservative (v7x-sized) fallback
    if cap >= 100 * 1024 * 1024:
        # v5e / v6e: 128 MiB physical VMEM — use the headroom.
        return 48 * 1024 * 1024, 80 * 1024 * 1024
    # v7x: 64 MiB per TensorCore — keep blocks + f32 temps + Mosaic scratch
    # comfortably under the limit.
    return 20 * 1024 * 1024, 48 * 1024 * 1024


def _choose_tile_rows(rows, hidden, in_dtype, out_dtype, block_budget_bytes):
    align = _row_alignment(in_dtype)
    in_b = jnp.dtype(in_dtype).itemsize
    out_b = jnp.dtype(out_dtype).itemsize
    # Per grid step: double-buffered input + output tiles, plus the f32
    # temporaries (x upcast + normed, ~8 B/elem) that the mean() reduction
    # forces to materialize in VMEM scratch.
    bytes_per_row = hidden * (2 * in_b + 2 * out_b + 8)
    tile = max(align, block_budget_bytes // max(bytes_per_row, 1))

    # Byte-based cap on the input block (not a fixed row count): past ~16 MiB
    # per block the HBM roofline is already saturated.
    max_in_block_bytes = 16 * 1024 * 1024
    tile = min(tile, max(align, max_in_block_bytes // max(hidden * in_b, 1)))

    tile = max((tile // align) * align, align)
    rows_aligned = _round_up(rows, align)
    tile = min(tile, rows_aligned)

    # Prefer >= target_steps grid steps so each TensorCore (v7x has 2, sharing
    # the "parallel" grid axis) gets several steps to pipeline against — but
    # never shrink below a ~2 MiB input block where HBM BW stops saturating.
    target_steps = 8
    min_block_rows = _round_up(
        max(align, pl.cdiv(2 * 1024 * 1024, max(hidden * in_b, 1))), align)
    steps = pl.cdiv(rows, tile)
    if steps < target_steps and rows_aligned > min_block_rows:
        smaller = _round_up(pl.cdiv(rows, target_steps), align)
        tile = min(tile, max(smaller, min_block_rows))
        tile = min(tile, rows_aligned)

    return max(tile, align)


def rmsnorm(hidden_states, weight, eps=1e-5, out_dtype=None, tile_rows=None,
            strict_dtype_roundtrip=True, activation_buffers=2):
    """RMSNorm forward.  hidden_states: (..., hidden); weight: (hidden,).

    out_dtype defaults to strict torch promotion
    jnp.result_type(weight.dtype, hidden_states.dtype).  Pass
    out_dtype=hidden_states.dtype for the llama-style bf16-out variant.
    Forward the model's rms_norm_eps (some Llama configs use 1e-6).
    """
    orig_shape = hidden_states.shape
    hidden = orig_shape[-1]
    x2d = hidden_states.reshape(-1, hidden)
    rows = x2d.shape[0]

    if out_dtype is None:
        # torch: f32 weight * normed.type_as(x) promotes to result_type.
        out_dtype = jnp.result_type(weight.dtype, hidden_states.dtype)

    block_budget_bytes, vmem_limit_bytes = _vmem_params()
    if tile_rows is None:
        tile_rows = _choose_tile_rows(rows, hidden, x2d.dtype, out_dtype,
                                      block_budget_bytes)

    w2d = weight.reshape(1, hidden)

    # Optional deeper prefetch for small-hidden / exposed-DMA profiles.
    if activation_buffers and activation_buffers > 2:
        x_spec = pl.BlockSpec((tile_rows, hidden), lambda i: (i, 0),
                              pipeline_mode=pl.Buffered(activation_buffers))
    else:
        x_spec = pl.BlockSpec((tile_rows, hidden), lambda i: (i, 0))

    out = pl.pallas_call(
        functools.partial(_rmsnorm_kernel, eps=eps,
                          strict_roundtrip=strict_dtype_roundtrip),
        out_shape=jax.ShapeDtypeStruct((rows, hidden), out_dtype),
        grid_spec=pltpu.PrefetchScalarGridSpec(
            num_scalar_prefetch=0,
            grid=(pl.cdiv(rows, tile_rows),),       # ragged last block, no host pad
            in_specs=[
                x_spec,
                pl.BlockSpec((1, hidden), lambda i: (0, 0)),   # weight stays resident
            ],
            out_specs=pl.BlockSpec((tile_rows, hidden), lambda i: (i, 0)),
        ),
        compiler_params=pltpu.CompilerParams(
            dimension_semantics=("parallel",),
            vmem_limit_bytes=vmem_limit_bytes,
        ),
    )(x2d, w2d)

    return out.reshape(orig_shape[:-1] + (hidden,))


if __name__ == "__main__":
    batch, seq, hidden = 2, 8, 32
    eps = 1e-5

    key = jax.random.PRNGKey(0)
    x = jax.random.normal(key, (batch, seq, hidden), dtype=jnp.float32)

    # deterministic parameter init: nn.Parameter(torch.ones(hidden_size))
    weight = jnp.ones((hidden,), dtype=jnp.float32)

    out = rmsnorm(x, weight, eps=eps)
    out = jax.block_until_ready(out)

    # reference check (plain JAX, torch-faithful math)
    xf = x.astype(jnp.float32)
    var = jnp.mean(xf * xf, axis=-1, keepdims=True)
    normed = (xf * jax.lax.rsqrt(var + eps)).astype(x.dtype)      # .type_as(x)
    ref = (weight.astype(jnp.float32) * normed.astype(jnp.float32))
    ref = ref.astype(jnp.result_type(weight.dtype, x.dtype))

    assert out.shape == ref.shape, (out.shape, ref.shape)
    assert out.dtype == ref.dtype, (out.dtype, ref.dtype)
    assert jnp.allclose(out, ref, atol=1e-5, rtol=1e-5)

    print("KERNEL_OK")
</pallas_src>

<mosaic_0001>
module attributes {stable_mosaic.version = 11 : i64} {
  func.func @_rmsnorm_kernel(%arg0: i32, %arg1: memref<16x32xf32, #tpu.memory_space<vmem>>, %arg2: memref<1x32xf32, #tpu.memory_space<vmem>>, %arg3: memref<16x32xf32, #tpu.memory_space<vmem>>) attributes {dimension_semantics = [#tpu.dimension_semantics<parallel>], iteration_bounds = array<i64: 1>, scalar_prefetch = 0 : i64, scratch_operands = 0 : i64, tpu.core_type = #tpu.core_type<tc>, window_params = [{transform_indices = @transform_0, window_bounds = array<i64: 16, 32>}, {pipeline_mode = #tpu.pipeline_mode<synchronous>, transform_indices = @transform_1, window_bounds = array<i64: 1, 32>}, {transform_indices = @transform_2, window_bounds = array<i64: 16, 32>}]} {
    %c0 = arith.constant 0 : index
    %c0_0 = arith.constant 0 : index
    %0 = vector.load %arg1[%c0, %c0_0] : memref<16x32xf32, #tpu.memory_space<vmem>>, vector<16x32xf32>
    %1 = arith.mulf %0, %0 : vector<16x32xf32>
    %cst = arith.constant dense<0.000000e+00> : vector<16xf32>
    %2 = vector.multi_reduction <add>, %1, %cst [1] : vector<16x32xf32> to vector<16xf32>
    %3 = vector.shape_cast %2 : vector<16xf32> to vector<16x1xf32>
    %cst_1 = arith.constant 3.200000e+01 : f32
    %4 = vector.broadcast %cst_1 : f32 to vector<16x1xf32>
    %5 = arith.divf %3, %4 : vector<16x1xf32>
    %cst_2 = arith.constant 9.99999974E-6 : f32
    %6 = vector.broadcast %cst_2 : f32 to vector<16x1xf32>
    %7 = arith.addf %5, %6 : vector<16x1xf32>
    %8 = math.rsqrt %7 : vector<16x1xf32>
    %9 = vector.broadcast %8 : vector<16x1xf32> to vector<16x32xf32>
    %10 = arith.mulf %0, %9 : vector<16x32xf32>
    %c0_3 = arith.constant 0 : index
    %c0_4 = arith.constant 0 : index
    %11 = vector.load %arg2[%c0_3, %c0_4] : memref<1x32xf32, #tpu.memory_space<vmem>>, vector<1x32xf32>
    %12 = vector.broadcast %11 : vector<1x32xf32> to vector<16x32xf32>
    %13 = arith.mulf %12, %10 : vector<16x32xf32>
    %c0_5 = arith.constant 0 : index
    %c0_6 = arith.constant 0 : index
    %14 = vector.load %arg3[%c0_5, %c0_6] : memref<16x32xf32, #tpu.memory_space<vmem>>, vector<16x32xf32>
    tpu.vector_store %arg3[%c0_5, %c0_6], %13 {strides = array<i32>} : memref<16x32xf32, #tpu.memory_space<vmem>>, vector<16x32xf32>,
    return
  }
  func.func @transform_0(%arg0: i32) -> (i32, i32) {
    %c0_i32 = arith.constant 0 : i32
    %c0_i32_0 = arith.constant 0 : i32
    return %arg0, %c0_i32 : i32, i32
  }
  func.func @transform_1(%arg0: i32) -> (i32, i32) {
    %c0_i32 = arith.constant 0 : i32
    %c0_i32_0 = arith.constant 0 : i32
    %c0_i32_1 = arith.constant 0 : i32
    return %c0_i32, %c0_i32_0 : i32, i32
  }
  func.func @transform_2(%arg0: i32) -> (i32, i32) {
    %c0_i32 = arith.constant 0 : i32
    %c0_i32_0 = arith.constant 0 : i32
    return %arg0, %c0_i32 : i32, i32
  }
}

</mosaic_0001>

<llo_original>
// kernel: tpu_custom_call.1
$region0: #{tpu_custom_call.1}
  #allocation0 [shape = 'u32[]', space=smem, size = 0x4, offset = 0x4, fixed_abs, tag = 'smem constant byte address 0x4 - core index']
  #allocation1 [shape = 'u32[144,128]{1,0:T(1,128)}', space=vmem, size = 0x12000, scoped, tag = 'internal scratch']
  %s0 = inlined_call_operand.hbm [shape: f32[16,32], index: 0, kind: input, shape index: {}]
  %s1 = inlined_call_operand.vmem [shape: f32[1,32], index: 1, kind: input, shape index: {}]
  %s2 = inlined_call_operand.hbm [shape: f32[16,32], index: 2, kind: output, shape index: {}]
  %s3 = sld [smem:[#allocation0]]
  $region22: #{tpu_custom_call.1} parent=0
    _
  %s5 = ssub.s32 1, %s3
  %s6 = scalar_select 0, %s5, %s3
  $region1: #{tpu_custom_call.1} parent=0
    #allocation2 [shape = 'u8[8192]{0}', space=vmem, size = 0x2000, scoped, tag = 'input window, operand 0, single buffered']
    #allocation3 [shape = 's32[1]{0}', space=sflag, size = 0x4, scoped, tag = 'scoped memory for tpu_custom_call.1']
    #allocation4 [shape = 's32[1]{0}', space=sflag, size = 0x4, scoped, tag = 'scoped memory for tpu_custom_call.1']
    #allocation5 [shape = 'u8[8192]{0}', space=vmem, size = 0x2000, scoped, tag = 'output window, operand 0, single buffered']
    %7 = vsyncpa [#allocation3], 0
    %8 = vsyncpa [#allocation4], 0
    // Predicated region
    $region2: #{tpu_custom_call.1} parent=1 // pred_check
      _
    $region3: #{tpu_custom_call.1} parent=1 // pred_check_branch
      %10 = sbr.rel (0) target = $region5
    $region4: #{tpu_custom_call.1} parent=1 // pred_region
      %s12 = ssub.s32 256, 256
      %13 = vsyncadd [#allocation3], %s12
      %s14 = sshll.u32 [#allocation2], 4
      %s15 = int_to_ptr.vmem [resolvable:$true] %s14
      %20 = dma.hbm_to_vmem [thread:$0]  %s0, 256, %s15, [#allocation3], 128, 128, 8
    $region5: #{tpu_custom_call.1} parent=1 // pred_fallthru
      _
    // Predicated region
    $region6: #{tpu_custom_call.1} parent=1 // pred_check
      _
    $region7: #{tpu_custom_call.1} parent=1 // pred_check_branch
      %22 = sbr.rel (0) target = $region9
    $region8: #{tpu_custom_call.1} parent=1 // pred_region
      _
    $region9: #{tpu_custom_call.1} parent=1 // pred_fallthru
      _
    // Predicated region
    $region10: #{tpu_custom_call.1} parent=1 // pred_check
      _
    $region11: #{tpu_custom_call.1} parent=1 // pred_check_branch
      %24 = sbr.rel (0) target = $region13
    $region12: #{tpu_custom_call.1} parent=1 // pred_region
      %25 = dma.done [#allocation3], 256
    $region13: #{tpu_custom_call.1} parent=1 // pred_fallthru
      _
    %v26 = vld [vmem:[#allocation2] sm:$0xff]
    %v27 = vld [vmem:[#allocation2 + $0x8] sm:$0xff]
    %v28 = vmul.f32 %v26, %v26
    %v29 = vmul.f32 %v27, %v27
    %vm30 = vcmask 261120
    %v31 = vsel %vm30, %v28, 0.0
    %32 = vadd.xlane.f32.xlu0 %v31
    %v33 = vpop.xlane.xlu0 %32
    %v34 = vsel %vm30, %v29, 0.0
    %35 = vadd.xlane.f32.xlu0 %v34
    %v36 = vpop.xlane.xlu0 %35
    %v37 = vrcp.pop 32.0
    %v38 = vmul.f32 %v33, %v37
    %v39 = vmul.f32 %v36, %v37
    %v40 = vadd.f32 %v38, 1e-05
    %v41 = vadd.f32 %v39, 1e-05
    %v42 = vrsqrt.pop %v40
    %v43 = vrsqrt.pop %v41
    %v44 = vmul.f32 %v26, %v42
    %v45 = vmul.f32 %v27, %v43
    %v46 = vld [vmem:[%s1] sm:$0x1]
    %v48 = vlaneseq
    %v49 = vshrl.u32 %v48, 7
    %v50 = vsub.s32 0, %v49
    %v51 = vrot.slane %v46, %v50
    %v53 = vmul.f32 %v51, %v44
    %v54 = vmul.f32 %v51, %v45
    %55 = vst.msk [vmem:[#allocation5] sm:$0xff] %vm30, %v53
    %56 = vst.msk [vmem:[#allocation5 + $0x8] sm:$0xff] %vm30, %v54
    // Predicated region
    $region14: #{tpu_custom_call.1} parent=1 // pred_check
      _
    $region15: #{tpu_custom_call.1} parent=1 // pred_check_branch
      %58 = sbr.rel (0) target = $region17
    $region16: #{tpu_custom_call.1} parent=1 // pred_region
      %s60 = ssub.s32 256, 256
      %61 = vsyncadd [#allocation4], %s60
      %s62 = sshll.u32 [#allocation5], 4
      %s63 = int_to_ptr.vmem [resolvable:$true] %s62
      %68 = dma.vmem_to_hbm [thread:$0]  %s63, 256, %s2, [#allocation4], 128, 128, 8
    $region17: #{tpu_custom_call.1} parent=1 // pred_fallthru
      _
    // Predicated region
    $region18: #{tpu_custom_call.1} parent=1 // pred_check
      _
    $region19: #{tpu_custom_call.1} parent=1 // pred_check_branch
      %70 = sbr.rel (0) target = $region21
    $region20: #{tpu_custom_call.1} parent=1 // pred_region
      %71 = dma.done [#allocation4], 256
    $region21: #{tpu_custom_call.1} parent=1 // pred_fallthru
      _
    %72 = vsyncpa [#allocation3], 1
    %73 = vsyncpa [#allocation4], 1

</llo_original>
